<compile_context>
chip_gen: v7x
topology: tpu7x:2x2x1
jax: 0.10.0
libtpu: 0.0.40
codegen_flags: <defaults>
</compile_context>

<pallas_src>
import jax
import jax.numpy as jnp
from jax.experimental import pallas as pl
from jax.experimental.pallas import tpu as pltpu


_HID = 64  # hidden width of fc1 / fc2 (fixed by the module)


def _round_up(n, m):
    return ((n + m - 1) // m) * m


def _cdiv(a, b):
    return (a + b - 1) // b


def _softplus(x):
    # Numerically stable softplus in f32 (matches F.softplus, beta=1).
    return jnp.maximum(x, 0.0) + jnp.log1p(jnp.exp(-jnp.abs(x)))


def _flatten_like_torch(x, in_dim):
    # Mirrors: x.flatten(ndim-2, -1).reshape(-1, in_dim) when ndim >= 2.
    if x.ndim >= 2:
        x = x.reshape(x.shape[:-2] + (x.shape[-2] * x.shape[-1],))
        x = x.reshape(-1, in_dim)
    return x


def _make_actor_kernel(scale: float, bias: float, out_dim: int):
    """Fused 4-layer Actor MLP, feature-major, over one batch tile per step."""

    def actor_kernel(x_ref, w1_ref, b1_ref, w2_ref, b2_ref, wh_ref, bh_ref,
                     o_ref):
        # x tile arrives in its producer dtype (f32); cast to bf16 in-register
        # (free VPU filler under the MXU work), no extra wrapper pass.
        x = x_ref[...].astype(jnp.bfloat16)                  # [TB, in_dim]

        # fc1 + tanh, feature-major: contract the in_dim axis of both operands
        # -> [64, TB].  bf16 MXU inputs, f32 accumulate + elementwise.
        h1 = jnp.tanh(
            jax.lax.dot_general(w1_ref[...], x,
                                (((1,), (1,)), ((), ())),
                                preferred_element_type=jnp.float32)
            + b1_ref[...])                                    # [64, TB] f32

        # fc2 + tanh: [64, 64] @ [64, TB] -> [64, TB]
        h2 = jnp.tanh(
            jnp.dot(w2_ref[...], h1.astype(jnp.bfloat16),
                    preferred_element_type=jnp.float32)
            + b2_ref[...])                                    # [64, TB] f32

        # fused mu|sigma head: [2*out_dim, 64] @ [64, TB] -> [2*out_dim, TB]
        head = (jnp.dot(wh_ref[...], h2.astype(jnp.bfloat16),
                        preferred_element_type=jnp.float32)
                + bh_ref[...])                                # [2*out, TB] f32

        # mu rows get tanh/affine, sigma rows get softplus (no redundant EUP
        # work); both stores are lane-dense over the TB lane axis.
        o_ref[:out_dim, :] = scale * jnp.tanh(head[:out_dim, :]) - bias
        o_ref[out_dim:, :] = _softplus(head[out_dim:, :])

    return actor_kernel


def _actor_forward_jnp(x, params, scale, bias):
    """Plain-jnp path (tiny batches) / f32 reference. Same math as the module.

    params are stored in PyTorch layout: W [out, in], b [out]."""
    h1 = jnp.tanh(x @ params["w1"].T + params["b1"])
    h2 = jnp.tanh(h1 @ params["w2"].T + params["b2"])
    mu = scale * jnp.tanh(h2 @ params["w_mu"].T + params["b_mu"]) - bias
    sigma = _softplus(h2 @ params["w_sigma"].T + params["b_sigma"])
    return mu, sigma


def prepare_actor_kernel_params(params):
    """One-time (cacheable) kernel-ready param prep: bf16 weights in
    feature-major (PyTorch [out, in]) layout, fused mu|sigma head, f32 biases
    as [fan_out, 1] columns.  Hoisted out of the per-call path."""
    return {
        "w1": params["w1"].astype(jnp.bfloat16),                      # [64, in]
        "b1": params["b1"].reshape(-1, 1).astype(jnp.float32),        # [64, 1]
        "w2": params["w2"].astype(jnp.bfloat16),                      # [64, 64]
        "b2": params["b2"].reshape(-1, 1).astype(jnp.float32),        # [64, 1]
        "w_head": jnp.concatenate(
            [params["w_mu"], params["w_sigma"]], axis=0
        ).astype(jnp.bfloat16),                                       # [2*out, 64]
        "b_head": jnp.concatenate(
            [params["b_mu"], params["b_sigma"]], axis=0
        ).reshape(-1, 1).astype(jnp.float32),                         # [2*out, 1]
    }


def actor_forward(x, params, in_dim, out_dim, action_low, action_high,
                  *, kernel_params=None, block_b=4096, min_kernel_batch=256):
    """PyTorch-equivalent Actor.forward: flatten glue + fused Pallas kernel.

    Pass a cached `kernel_params` (from prepare_actor_kernel_params) to avoid
    re-doing the bf16 casts / head fusion on every call."""
    x = _flatten_like_torch(x, in_dim).astype(jnp.float32)
    scale = float((action_high - action_low) / 2.0)
    bias = float(scale - action_high)
    B = x.shape[0]

    # Tiny batches: fixed pallas_call / DMA overhead dwarfs ~100 KFLOP of work;
    # XLA's fused dot path is already near-optimal there.
    if B < min_kernel_batch:
        return _actor_forward_jnp(x, params, scale, bias)

    if kernel_params is None:
        kernel_params = prepare_actor_kernel_params(params)

    # Batch tile: multiple of 128 so every vreg is lane-dense in the
    # feature-major layout.  Split into >=2 grid steps when possible so both
    # v7x TensorCores get a tile; on single-TC v5e/v6e the extra ~0.35us step
    # is negligible.  Cap at block_b rows (a few MiB of VMEM working set).
    tb = max(128, min(block_b, _round_up(_cdiv(B, 2), 128)))
    grid = (pl.cdiv(B, tb),)
    two_out = 2 * out_dim

    kernel = _make_actor_kernel(scale, bias, out_dim)

    head_fm = pl.pallas_call(
        kernel,
        out_shape=jax.ShapeDtypeStruct((two_out, B), jnp.float32),
        grid=grid,
        in_specs=[
            pl.BlockSpec((tb, in_dim), lambda i: (i, 0)),       # x: tiled over B
            pl.BlockSpec((_HID, in_dim), lambda i: (0, 0)),     # w1: VMEM resident
            pl.BlockSpec((_HID, 1), lambda i: (0, 0)),          # b1
            pl.BlockSpec((_HID, _HID), lambda i: (0, 0)),       # w2
            pl.BlockSpec((_HID, 1), lambda i: (0, 0)),          # b2
            pl.BlockSpec((two_out, _HID), lambda i: (0, 0)),    # fused head W
            pl.BlockSpec((two_out, 1), lambda i: (0, 0)),       # fused head b
        ],
        # Lane-dense output: [2*out_dim, TB] tile, lane axis = batch tile.
        out_specs=pl.BlockSpec((two_out, tb), lambda i: (0, i)),
        compiler_params=pltpu.CompilerParams(
            dimension_semantics=("parallel",)),   # shard B across TCs (v7x)
    )(x, kernel_params["w1"], kernel_params["b1"],
      kernel_params["w2"], kernel_params["b2"],
      kernel_params["w_head"], kernel_params["b_head"])

    # Split the fused feature-major head back into batch-major (mu, sigma).
    mu = head_fm[:out_dim, :].T
    sigma = head_fm[out_dim:, :].T
    return mu, sigma


def init_actor_params(key, in_dim, out_dim):
    """Parameter init mirroring the module: orthogonal weights (gain=1),
    PyTorch-Linear-default uniform biases. Stored in PyTorch layout
    (W: [out, in], b: [out])."""
    ortho = jax.nn.initializers.orthogonal(scale=1.0)
    keys = jax.random.split(key, 8)

    def linear(kw, kb, fan_in, fan_out):
        w = ortho(kw, (fan_out, fan_in), jnp.float32)      # PyTorch [out, in]
        bound = 1.0 / jnp.sqrt(jnp.float32(fan_in))
        b = jax.random.uniform(kb, (fan_out,), jnp.float32, -bound, bound)
        return w, b

    w1, b1 = linear(keys[0], keys[1], in_dim, _HID)
    w2, b2 = linear(keys[2], keys[3], _HID, _HID)
    w_mu, b_mu = linear(keys[4], keys[5], _HID, out_dim)
    w_sg, b_sg = linear(keys[6], keys[7], _HID, out_dim)
    return {"w1": w1, "b1": b1, "w2": w2, "b2": b2,
            "w_mu": w_mu, "b_mu": b_mu, "w_sigma": w_sg, "b_sigma": b_sg}


if __name__ == "__main__":
    in_dim, out_dim = 32, 4
    action_low, action_high = -2.0, 2.0

    key = jax.random.PRNGKey(0)
    k_param, k_x, k_odd, k_tiny = jax.random.split(key, 4)
    params = init_actor_params(k_param, in_dim, out_dim)
    # One-time kernel-param prep (hoisted out of the per-call path).
    kparams = prepare_actor_kernel_params(params)

    scale = (action_high - action_low) / 2.0
    bias = scale - action_high

    # Main kernel path: [512, 4, 8] flattens (last two dims) to [512, 32];
    # B=512 -> 2 full grid steps of 256 rows (both v7x TCs get work).
    x = jax.random.normal(k_x, (512, 4, 8), dtype=jnp.float32)
    mu, sigma = actor_forward(x, params, in_dim, out_dim,
                              action_low, action_high, kernel_params=kparams)
    jax.block_until_ready((mu, sigma))
    assert mu.shape == (512, out_dim) and sigma.shape == (512, out_dim)
    assert bool(jnp.all(jnp.isfinite(mu))) and bool(jnp.all(sigma >= 0.0))

    # Validate the fused bf16-MXU kernel against the pure-f32 jnp reference.
    # bf16 matmul inputs (f32 accumulate/elementwise) give ~1e-2 abs error.
    x_flat = _flatten_like_torch(x, in_dim)
    mu_ref, sigma_ref = _actor_forward_jnp(x_flat, params, scale, bias)
    assert float(jnp.max(jnp.abs(mu - mu_ref))) < 1e-1
    assert float(jnp.max(jnp.abs(sigma - sigma_ref))) < 1e-1

    # Ragged-batch path: B=300 -> 2 grid steps, last tile partially masked.
    x_odd = jax.random.normal(k_odd, (300, 4, 8), dtype=jnp.float32)
    mu_o, sigma_o = actor_forward(x_odd, params, in_dim, out_dim,
                                  action_low, action_high,
                                  kernel_params=kparams)
    jax.block_until_ready((mu_o, sigma_o))
    mu_or, sigma_or = _actor_forward_jnp(_flatten_like_torch(x_odd, in_dim),
                                         params, scale, bias)
    assert mu_o.shape == (300, out_dim) and sigma_o.shape == (300, out_dim)
    assert float(jnp.max(jnp.abs(mu_o - mu_or))) < 1e-1
    assert float(jnp.max(jnp.abs(sigma_o - sigma_or))) < 1e-1

    # Tiny-batch path (B=2) takes the plain-jnp fallback (per perf review).
    x_tiny = jax.random.normal(k_tiny, (2, 4, 8), dtype=jnp.float32)
    mu_t, sigma_t = actor_forward(x_tiny, params, in_dim, out_dim,
                                  action_low, action_high,
                                  kernel_params=kparams)
    jax.block_until_ready((mu_t, sigma_t))
    assert mu_t.shape == (2, out_dim) and sigma_t.shape == (2, out_dim)

    print("KERNEL_OK")
</pallas_src>

<mosaic_0001>
module attributes {stable_mosaic.version = 11 : i64} {
  func.func @actor_kernel(%arg0: i32, %arg1: memref<256x32xf32, #tpu.memory_space<vmem>>, %arg2: memref<64x32xbf16, #tpu.memory_space<vmem>>, %arg3: memref<64x1xf32, #tpu.memory_space<vmem>>, %arg4: memref<64x64xbf16, #tpu.memory_space<vmem>>, %arg5: memref<64x1xf32, #tpu.memory_space<vmem>>, %arg6: memref<8x64xbf16, #tpu.memory_space<vmem>>, %arg7: memref<8x1xf32, #tpu.memory_space<vmem>>, %arg8: memref<8x256xf32, #tpu.memory_space<vmem>>) attributes {dimension_semantics = [#tpu.dimension_semantics<parallel>], iteration_bounds = array<i64: 2>, scalar_prefetch = 0 : i64, scratch_operands = 0 : i64, tpu.core_type = #tpu.core_type<tc>, window_params = [{transform_indices = @transform_0, window_bounds = array<i64: 256, 32>}, {pipeline_mode = #tpu.pipeline_mode<synchronous>, transform_indices = @transform_1, window_bounds = array<i64: 64, 32>}, {pipeline_mode = #tpu.pipeline_mode<synchronous>, transform_indices = @transform_2, window_bounds = array<i64: 64, 1>}, {pipeline_mode = #tpu.pipeline_mode<synchronous>, transform_indices = @transform_3, window_bounds = array<i64: 64, 64>}, {pipeline_mode = #tpu.pipeline_mode<synchronous>, transform_indices = @transform_4, window_bounds = array<i64: 64, 1>}, {pipeline_mode = #tpu.pipeline_mode<synchronous>, transform_indices = @transform_5, window_bounds = array<i64: 8, 64>}, {pipeline_mode = #tpu.pipeline_mode<synchronous>, transform_indices = @transform_6, window_bounds = array<i64: 8, 1>}, {transform_indices = @transform_7, window_bounds = array<i64: 8, 256>}]} {
    %c0 = arith.constant 0 : index
    %c0_0 = arith.constant 0 : index
    %0 = vector.load %arg1[%c0, %c0_0] : memref<256x32xf32, #tpu.memory_space<vmem>>, vector<256x32xf32>
    %1 = arith.truncf %0 : vector<256x32xf32> to vector<256x32xbf16>
    %c0_1 = arith.constant 0 : index
    %c0_2 = arith.constant 0 : index
    %2 = vector.load %arg2[%c0_1, %c0_2] : memref<64x32xbf16, #tpu.memory_space<vmem>>, vector<64x32xbf16>
    %cst = arith.constant dense<0.000000e+00> : vector<64x256xf32>
    %3 = tpu.matmul %2, %1, %cst {dimension_numbers = #tpu.dot_dimension_numbers<[1], [1], [0], [0], [0, 0, 1, 0], [], []>} : vector<64x32xbf16>, vector<256x32xbf16>, vector<64x256xf32> -> vector<64x256xf32>
    %c0_3 = arith.constant 0 : index
    %c0_4 = arith.constant 0 : index
    %4 = vector.load %arg3[%c0_3, %c0_4] : memref<64x1xf32, #tpu.memory_space<vmem>>, vector<64x1xf32>
    %5 = vector.broadcast %4 : vector<64x1xf32> to vector<64x256xf32>
    %6 = arith.addf %3, %5 : vector<64x256xf32>
    %7 = math.tanh %6 : vector<64x256xf32>
    %c0_5 = arith.constant 0 : index
    %c0_6 = arith.constant 0 : index
    %8 = vector.load %arg4[%c0_5, %c0_6] : memref<64x64xbf16, #tpu.memory_space<vmem>>, vector<64x64xbf16>
    %9 = arith.truncf %7 : vector<64x256xf32> to vector<64x256xbf16>
    %cst_7 = arith.constant dense<0.000000e+00> : vector<64x256xf32>
    %10 = tpu.matmul %8, %9, %cst_7 {dimension_numbers = #tpu.dot_dimension_numbers<[1], [0], [0], [1], [0, 0, 1, 1], [], []>} : vector<64x64xbf16>, vector<64x256xbf16>, vector<64x256xf32> -> vector<64x256xf32>
    %c0_8 = arith.constant 0 : index
    %c0_9 = arith.constant 0 : index
    %11 = vector.load %arg5[%c0_8, %c0_9] : memref<64x1xf32, #tpu.memory_space<vmem>>, vector<64x1xf32>
    %12 = vector.broadcast %11 : vector<64x1xf32> to vector<64x256xf32>
    %13 = arith.addf %10, %12 : vector<64x256xf32>
    %14 = math.tanh %13 : vector<64x256xf32>
    %c0_10 = arith.constant 0 : index
    %c0_11 = arith.constant 0 : index
    %15 = vector.load %arg6[%c0_10, %c0_11] : memref<8x64xbf16, #tpu.memory_space<vmem>>, vector<8x64xbf16>
    %16 = arith.truncf %14 : vector<64x256xf32> to vector<64x256xbf16>
    %cst_12 = arith.constant dense<0.000000e+00> : vector<8x256xf32>
    %17 = tpu.matmul %15, %16, %cst_12 {dimension_numbers = #tpu.dot_dimension_numbers<[1], [0], [0], [1], [0, 0, 1, 1], [], []>} : vector<8x64xbf16>, vector<64x256xbf16>, vector<8x256xf32> -> vector<8x256xf32>
    %c0_13 = arith.constant 0 : index
    %c0_14 = arith.constant 0 : index
    %18 = vector.load %arg7[%c0_13, %c0_14] : memref<8x1xf32, #tpu.memory_space<vmem>>, vector<8x1xf32>
    %19 = vector.broadcast %18 : vector<8x1xf32> to vector<8x256xf32>
    %20 = arith.addf %17, %19 : vector<8x256xf32>
    %21 = vector.extract_strided_slice %20 {offsets = [0, 0], sizes = [4, 256], strides = [1, 1]} : vector<8x256xf32> to vector<4x256xf32>
    %22 = math.tanh %21 : vector<4x256xf32>
    %cst_15 = arith.constant 2.000000e+00 : f32
    %23 = vector.broadcast %cst_15 : f32 to vector<4x256xf32>
    %24 = arith.mulf %23, %22 : vector<4x256xf32>
    %cst_16 = arith.constant 0.000000e+00 : f32
    %25 = vector.broadcast %cst_16 : f32 to vector<4x256xf32>
    %26 = arith.subf %24, %25 : vector<4x256xf32>
    %c0_17 = arith.constant 0 : index
    %c0_18 = arith.constant 0 : index
    %27 = vector.load %arg8[%c0_17, %c0_18] : memref<8x256xf32, #tpu.memory_space<vmem>>, vector<4x256xf32>
    tpu.vector_store %arg8[%c0_17, %c0_18], %26 {strides = array<i32>} : memref<8x256xf32, #tpu.memory_space<vmem>>, vector<4x256xf32>,
    %28 = vector.extract_strided_slice %20 {offsets = [4, 0], sizes = [4, 256], strides = [1, 1]} : vector<8x256xf32> to vector<4x256xf32>
    %cst_19 = arith.constant 0.000000e+00 : f32
    %29 = vector.broadcast %cst_19 : f32 to vector<4x256xf32>
    %30 = arith.maximumf %28, %29 : vector<4x256xf32>
    %31 = math.absf %28 : vector<4x256xf32>
    %cst_20 = arith.constant 0.000000e+00 : f32
    %32 = vector.broadcast %cst_20 : f32 to vector<4x256xf32>
    %33 = arith.subf %32, %31 : vector<4x256xf32>
    %34 = math.exp %33 : vector<4x256xf32>
    %35 = math.log1p %34 : vector<4x256xf32>
    %36 = arith.addf %30, %35 : vector<4x256xf32>
    %c4 = arith.constant 4 : index
    %c0_21 = arith.constant 0 : index
    %37 = vector.load %arg8[%c4, %c0_21] : memref<8x256xf32, #tpu.memory_space<vmem>>, vector<4x256xf32>
    tpu.vector_store %arg8[%c4, %c0_21], %36 {strides = array<i32>} : memref<8x256xf32, #tpu.memory_space<vmem>>, vector<4x256xf32>,
    return
  }
  func.func @transform_0(%arg0: i32) -> (i32, i32) {
    %c0_i32 = arith.constant 0 : i32
    %c0_i32_0 = arith.constant 0 : i32
    return %arg0, %c0_i32 : i32, i32
  }
  func.func @transform_1(%arg0: i32) -> (i32, i32) {
    %c0_i32 = arith.constant 0 : i32
    %c0_i32_0 = arith.constant 0 : i32
    %c0_i32_1 = arith.constant 0 : i32
    return %c0_i32, %c0_i32_0 : i32, i32
  }
  func.func @transform_2(%arg0: i32) -> (i32, i32) {
    %c0_i32 = arith.constant 0 : i32
    %c0_i32_0 = arith.constant 0 : i32
    %c0_i32_1 = arith.constant 0 : i32
    return %c0_i32, %c0_i32_0 : i32, i32
  }
  func.func @transform_3(%arg0: i32) -> (i32, i32) {
    %c0_i32 = arith.constant 0 : i32
    %c0_i32_0 = arith.constant 0 : i32
    %c0_i32_1 = arith.constant 0 : i32
    return %c0_i32, %c0_i32_0 : i32, i32
  }
  func.func @transform_4(%arg0: i32) -> (i32, i32) {
    %c0_i32 = arith.constant 0 : i32
    %c0_i32_0 = arith.constant 0 : i32
    %c0_i32_1 = arith.constant 0 : i32
    return %c0_i32, %c0_i32_0 : i32, i32
  }
  func.func @transform_5(%arg0: i32) -> (i32, i32) {
    %c0_i32 = arith.constant 0 : i32
    %c0_i32_0 = arith.constant 0 : i32
    %c0_i32_1 = arith.constant 0 : i32
    return %c0_i32, %c0_i32_0 : i32, i32
  }
  func.func @transform_6(%arg0: i32) -> (i32, i32) {
    %c0_i32 = arith.constant 0 : i32
    %c0_i32_0 = arith.constant 0 : i32
    %c0_i32_1 = arith.constant 0 : i32
    return %c0_i32, %c0_i32_0 : i32, i32
  }
  func.func @transform_7(%arg0: i32) -> (i32, i32) {
    %c0_i32 = arith.constant 0 : i32
    %c0_i32_0 = arith.constant 0 : i32
    return %c0_i32, %arg0 : i32, i32
  }
}

</mosaic_0001>

<llo_original>
// kernel: tpu_custom_call.1
$region0: #{tpu_custom_call.1}
  #allocation0 [shape = 'u32[]', space=smem, size = 0x4, offset = 0x4, fixed_abs, tag = 'smem constant byte address 0x4 - core index']
  #allocation1 [shape = 'u32[144,128]{1,0:T(1,128)}', space=vmem, size = 0x12000, scoped, tag = 'internal scratch']
  %s0 = inlined_call_operand.vmem [shape: f32[512,32], index: 0, kind: input, shape index: {}]
  %s1 = inlined_call_operand.vmem [shape: bf16[64,32], index: 1, kind: input, shape index: {}]
  %s2 = inlined_call_operand.vmem [shape: f32[64,1], index: 2, kind: input, shape index: {}]
  %s3 = inlined_call_operand.vmem [shape: bf16[64,64], index: 3, kind: input, shape index: {}]
  %s4 = inlined_call_operand.vmem [shape: f32[64,1], index: 4, kind: input, shape index: {}]
  %s5 = inlined_call_operand.vmem [shape: bf16[8,64], index: 5, kind: input, shape index: {}]
  %s6 = inlined_call_operand.vmem [shape: f32[8,1], index: 6, kind: input, shape index: {}]
  %s7 = inlined_call_operand.hbm [shape: f32[8,512], index: 7, kind: output, shape index: {}]
  %s8 = sld [smem:[#allocation0]]
  $region61: #{tpu_custom_call.1} parent=0
    _
  %s10 = ssub.s32 1, %s8
  %s11 = scalar_select 0, %s10, %s8
  $region1: #{tpu_custom_call.1} parent=0
    #allocation2 [shape = 'u8[16384]{0}', space=vmem, size = 0x4000, scoped, tag = 'output window, operand 0']
    #allocation3 [shape = 's32[2]{0}', space=sflag, size = 0x8, scoped, tag = 'scoped memory for tpu_custom_call.1']
    %12 = vsyncpa [#allocation3], 0
    %s13 = scalar_lea.sflag [#allocation3], 1
    %14 = vsyncpa %s13, 0
    loop: start=0, step=1, limit=4
    $region2: #{tpu_custom_call.1} parent=1 // loop_pre_header
      _
    $region3: #{tpu_custom_call.1} parent=1 // loop_header
      %s16 = sphi 0, %s20
      %p17 = scmp.ge.s32.totalorder %s16, 4
      %s26 = sphi 0, %s28
      %s29 = sphi 0, %s26
      %s30 = sphi 0, %s29
      %s46 = sphi 0, %s30
      %s50 = sphi 0, %s50
      %s52 = sphi 0, %s50
      %s53 = sphi 0, %s52
      %s67 = sphi 0, %s53
      %s71 = sphi 0, %s71
      %s73 = sphi 0, %s71
      %s74 = sphi 0, %s73
      %s88 = sphi 0, %s74
      %s92 = sphi 0, %s92
      %s94 = sphi 0, %s92
      %s95 = sphi 0, %s94
      %s109 = sphi 0, %s95
      %s113 = sphi 0, %s113
      %s115 = sphi 0, %s113
      %s116 = sphi 0, %s115
      %s130 = sphi 0, %s116
      %s134 = sphi 0, %s134
      %s136 = sphi 0, %s134
      %s137 = sphi 0, %s136
      %s151 = sphi 0, %s137
      %s155 = sphi 0, %s155
      %s157 = sphi 0, %s155
      %s158 = sphi 0, %s157
      %s172 = sphi 0, %s158
      %s178 = sphi 0, %s180
      %s181 = sphi 0, %s178
      %s182 = sphi 0, %s181
      %s198 = sphi 0, %s182
    $region4: #{tpu_custom_call.1} parent=1 // loop_header_branch
      %19 = sbr.rel (%p17) target = $region8
    $region5: #{tpu_custom_call.1} parent=1 // loop_body
      %s21 = ssub.s32 %s16, 1
      %s22 = ssub.s32 %s16, 2
      %s23 = sadd.s32 %s16, 1
      %s24 = ssub.s32 %s16, %s23
      %p25 = scmp.eq.s32.totalorder %s24, 0
      %s27 = sadd.s32 %s26, 1
      %s28 = scalar_select %p25, %s26, %s27
      %p31 = pneg %p25
      %p32 = scmp.eq.s32.totalorder %s16, 1
      %p33 = por %p31, %p32
      %p34 = scmp.ne.s32.totalorder %s26, %s29
      %p35 = scmp.eq.s32.totalorder %s16, 0
      %p36 = por %p34, %p35
      %p37 = scmp.ne.s32.totalorder %s26, %s29
      %p38 = scmp.eq.s32.totalorder %s21, 1
      %p39 = por %p37, %p38
      %p40 = scmp.ne.s32.totalorder %s29, %s30
      %p41 = scmp.eq.s32.totalorder %s21, 0
      %p42 = por %p40, %p41
      %p43 = scmp.ne.s32.totalorder %s29, %s30
      %p44 = scmp.eq.s32.totalorder %s22, 1
      %p45 = por %p43, %p44
      %p47 = scmp.ne.s32.totalorder %s30, %s46
      %p48 = scmp.eq.s32.totalorder %s22, 0
      %p49 = por %p47, %p48
      %s51 = sadd.s32 %s50, 1
      %p54 = scmp.eq.s32.totalorder %s16, 1
      %p55 = scmp.ne.s32.totalorder %s50, %s52
      %p56 = scmp.eq.s32.totalorder %s16, 0
      %p57 = por %p55, %p56
      %p58 = scmp.ne.s32.totalorder %s50, %s52
      %p59 = scmp.eq.s32.totalorder %s21, 1
      %p60 = por %p58, %p59
      %p61 = scmp.ne.s32.totalorder %s52, %s53
      %p62 = scmp.eq.s32.totalorder %s21, 0
      %p63 = por %p61, %p62
      %p64 = scmp.ne.s32.totalorder %s52, %s53
      %p65 = scmp.eq.s32.totalorder %s22, 1
      %p66 = por %p64, %p65
      %p68 = scmp.ne.s32.totalorder %s53, %s67
      %p69 = scmp.eq.s32.totalorder %s22, 0
      %p70 = por %p68, %p69
      %s72 = sadd.s32 %s71, 1
      %p75 = scmp.eq.s32.totalorder %s16, 1
      %p76 = scmp.ne.s32.totalorder %s71, %s73
      %p77 = scmp.eq.s32.totalorder %s16, 0
      %p78 = por %p76, %p77
      %p79 = scmp.ne.s32.totalorder %s71, %s73
      %p80 = scmp.eq.s32.totalorder %s21, 1
      %p81 = por %p79, %p80
      %p82 = scmp.ne.s32.totalorder %s73, %s74
      %p83 = scmp.eq.s32.totalorder %s21, 0
      %p84 = por %p82, %p83
      %p85 = scmp.ne.s32.totalorder %s73, %s74
      %p86 = scmp.eq.s32.totalorder %s22, 1
      %p87 = por %p85, %p86
      %p89 = scmp.ne.s32.totalorder %s74, %s88
      %p90 = scmp.eq.s32.totalorder %s22, 0
      %p91 = por %p89, %p90
      %s93 = sadd.s32 %s92, 1
      %p96 = scmp.eq.s32.totalorder %s16, 1
      %p97 = scmp.ne.s32.totalorder %s92, %s94
      %p98 = scmp.eq.s32.totalorder %s16, 0
      %p99 = por %p97, %p98
      %p100 = scmp.ne.s32.totalorder %s92, %s94
      %p101 = scmp.eq.s32.totalorder %s21, 1
      %p102 = por %p100, %p101
      %p103 = scmp.ne.s32.totalorder %s94, %s95
      %p104 = scmp.eq.s32.totalorder %s21, 0
      %p105 = por %p103, %p104
      %p106 = scmp.ne.s32.totalorder %s94, %s95
      %p107 = scmp.eq.s32.totalorder %s22, 1
      %p108 = por %p106, %p107
      %p110 = scmp.ne.s32.totalorder %s95, %s109
      %p111 = scmp.eq.s32.totalorder %s22, 0
      %p112 = por %p110, %p111
      %s114 = sadd.s32 %s113, 1
      %p117 = scmp.eq.s32.totalorder %s16, 1
      %p118 = scmp.ne.s32.totalorder %s113, %s115
      %p119 = scmp.eq.s32.totalorder %s16, 0
      %p120 = por %p118, %p119
      %p121 = scmp.ne.s32.totalorder %s113, %s115
      %p122 = scmp.eq.s32.totalorder %s21, 1
      %p123 = por %p121, %p122
      %p124 = scmp.ne.s32.totalorder %s115, %s116
      %p125 = scmp.eq.s32.totalorder %s21, 0
      %p126 = por %p124, %p125
      %p127 = scmp.ne.s32.totalorder %s115, %s116
      %p128 = scmp.eq.s32.totalorder %s22, 1
      %p129 = por %p127, %p128
      %p131 = scmp.ne.s32.totalorder %s116, %s130
      %p132 = scmp.eq.s32.totalorder %s22, 0
      %p133 = por %p131, %p132
      %s135 = sadd.s32 %s134, 1
      %p138 = scmp.eq.s32.totalorder %s16, 1
      %p139 = scmp.ne.s32.totalorder %s134, %s136
      %p140 = scmp.eq.s32.totalorder %s16, 0
      %p141 = por %p139, %p140
      %p142 = scmp.ne.s32.totalorder %s134, %s136
      %p143 = scmp.eq.s32.totalorder %s21, 1
      %p144 = por %p142, %p143
      %p145 = scmp.ne.s32.totalorder %s136, %s137
      %p146 = scmp.eq.s32.totalorder %s21, 0
      %p147 = por %p145, %p146
      %p148 = scmp.ne.s32.totalorder %s136, %s137
      %p149 = scmp.eq.s32.totalorder %s22, 1
      %p150 = por %p148, %p149
      %p152 = scmp.ne.s32.totalorder %s137, %s151
      %p153 = scmp.eq.s32.totalorder %s22, 0
      %p154 = por %p152, %p153
      %s156 = sadd.s32 %s155, 1
      %p159 = scmp.eq.s32.totalorder %s16, 1
      %p160 = scmp.ne.s32.totalorder %s155, %s157
      %p161 = scmp.eq.s32.totalorder %s16, 0
      %p162 = por %p160, %p161
      %p163 = scmp.ne.s32.totalorder %s155, %s157
      %p164 = scmp.eq.s32.totalorder %s21, 1
      %p165 = por %p163, %p164
      %p166 = scmp.ne.s32.totalorder %s157, %s158
      %p167 = scmp.eq.s32.totalorder %s21, 0
      %p168 = por %p166, %p167
      %p169 = scmp.ne.s32.totalorder %s157, %s158
      %p170 = scmp.eq.s32.totalorder %s22, 1
      %p171 = por %p169, %p170
      %p173 = scmp.ne.s32.totalorder %s158, %s172
      %p174 = scmp.eq.s32.totalorder %s22, 0
      %p175 = por %p173, %p174
      %s176 = ssub.s32 %s16, %s23
      %p177 = scmp.eq.s32.totalorder %s176, 0
      %s179 = sadd.s32 %s178, 1
      %s180 = scalar_select %p177, %s178, %s179
      %p183 = pneg %p177
      %p184 = scmp.eq.s32.totalorder %s16, 1
      %p185 = por %p183, %p184
      %p186 = scmp.ne.s32.totalorder %s178, %s181
      %p187 = scmp.eq.s32.totalorder %s16, 0
      %p188 = por %p186, %p187
      %p189 = scmp.ne.s32.totalorder %s178, %s181
      %p190 = scmp.eq.s32.totalorder %s21, 1
      %p191 = por %p189, %p190
      %p192 = scmp.ne.s32.totalorder %s181, %s182
      %p193 = scmp.eq.s32.totalorder %s21, 0
      %p194 = por %p192, %p193
      %p195 = scmp.ne.s32.totalorder %s181, %s182
      %p196 = scmp.eq.s32.totalorder %s22, 1
      %p197 = por %p195, %p196
      %p199 = scmp.ne.s32.totalorder %s182, %s198
      %p200 = scmp.eq.s32.totalorder %s22, 0
      %p201 = por %p199, %p200
      %p202 = scmp.le.s32.totalorder 1, %s16
      %p203 = scmp.lt.s32.totalorder %s16, 3
      %p204 = pnand %p202, %p203
      %p205 = pneg %p204
      // Predicated region
      $region9: #{tpu_custom_call.1} parent=5 // pred_check
        _
      $region10: #{tpu_custom_call.1} parent=5 // pred_check_branch
        %207 = sbr.rel (%p204) target = $region12
      $region11: #{tpu_custom_call.1} parent=5 // pred_region
        %s208 = ssub.s32 %s16, 1
        // Predicated region
        $region13: #{tpu_custom_call.1} parent=11 // pred_check
          %p209 = pneg %p63
        $region14: #{tpu_custom_call.1} parent=11 // pred_check_branch
          %211 = sbr.rel (%p209) target = $region16
        $region15: #{tpu_custom_call.1} parent=11 // pred_region
          _
        $region16: #{tpu_custom_call.1} parent=11 // pred_fallthru
          _
        // Predicated region
        $region17: #{tpu_custom_call.1} parent=11 // pred_check
          %p212 = pneg %p84
        $region18: #{tpu_custom_call.1} parent=11 // pred_check_branch
          %214 = sbr.rel (%p212) target = $region20
        $region19: #{tpu_custom_call.1} parent=11 // pred_region
          _
        $region20: #{tpu_custom_call.1} parent=11 // pred_fallthru
          _
        // Predicated region
        $region21: #{tpu_custom_call.1} parent=11 // pred_check
          %p215 = pneg %p105
        $region22: #{tpu_custom_call.1} parent=11 // pred_check_branch
          %217 = sbr.rel (%p215) target = $region24
        $region23: #{tpu_custom_call.1} parent=11 // pred_region
          _
        $region24: #{tpu_custom_call.1} parent=11 // pred_fallthru
          _
        // Predicated region
        $region25: #{tpu_custom_call.1} parent=11 // pred_check
          %p218 = pneg %p126
        $region26: #{tpu_custom_call.1} parent=11 // pred_check_branch
          %220 = sbr.rel (%p218) target = $region28
        $region27: #{tpu_custom_call.1} parent=11 // pred_region
          _
        $region28: #{tpu_custom_call.1} parent=11 // pred_fallthru
          _
        // Predicated region
        $region29: #{tpu_custom_call.1} parent=11 // pred_check
          %p221 = pneg %p147
        $region30: #{tpu_custom_call.1} parent=11 // pred_check_branch
          %223 = sbr.rel (%p221) target = $region32
        $region31: #{tpu_custom_call.1} parent=11 // pred_region
          _
        $region32: #{tpu_custom_call.1} parent=11 // pred_fallthru
          _
        // Predicated region
        $region33: #{tpu_custom_call.1} parent=11 // pred_check
          %p224 = pneg %p168
        $region34: #{tpu_custom_call.1} parent=11 // pred_check_branch
          %226 = sbr.rel (%p224) target = $region36
        $region35: #{tpu_custom_call.1} parent=11 // pred_region
          _
        $region36: #{tpu_custom_call.1} parent=11 // pred_fallthru
          _
      $region12: #{tpu_custom_call.1} parent=5 // pred_fallthru
        _
      %p227 = scmp.lt.s32.totalorder %s16, 2
      // Predicated region
      $region37: #{tpu_custom_call.1} parent=5 // pred_check
        %p228 = pneg %p227
      $region38: #{tpu_custom_call.1} parent=5 // pred_check_branch
        %230 = sbr.rel (%p228) target = $region40
      $region39: #{tpu_custom_call.1} parent=5 // pred_region
        // Predicated region
        $region41: #{tpu_custom_call.1} parent=39 // pred_check
          %p231 = pneg %p36
        $region42: #{tpu_custom_call.1} parent=39 // pred_check_branch
          %233 = sbr.rel (%p231) target = $region44
        $region43: #{tpu_custom_call.1} parent=39 // pred_region
          %s234 = smul.u32 32, %s16
          %p235 = scmp.lt.s32.totalorder %s234, 63
          %s236 = scalar_select %p235, %s234, 63
          %s237 = smul.addr %s236, 8
          %s238 = scalar_lea.vmem %s0, %s237
          %s239 = smul.u32 32, %s16
        $region44: #{tpu_custom_call.1} parent=39 // pred_fallthru
          _
      $region40: #{tpu_custom_call.1} parent=5 // pred_fallthru
        _
      %p240 = scmp.le.s32.totalorder 1, %s16
      %p241 = scmp.lt.s32.totalorder %s16, 3
      %p242 = pnand %p240, %p241
      %p243 = pneg %p242
      // Predicated region
      $region45: #{tpu_custom_call.1} parent=5 // pred_check
        _
      $region46: #{tpu_custom_call.1} parent=5 // pred_check_branch
        %245 = sbr.rel (%p242) target = $region48
      $region47: #{tpu_custom_call.1} parent=5 // pred_region
        %s246 = ssub.s32 %s16, 1
        %s247 = smul.u32 32, %s21
        %p248 = scmp.lt.s32.totalorder %s247, 63
        %s249 = scalar_select %p248, %s247, 63
        %s250 = smul.addr %s249, 8
        %s251 = scalar_lea.vmem %s0, %s250
        %p252 = pneg %p42
        %p253 = pneg %p39
        %p254 = pneg %p63
        %p255 = pneg %p60
        %p256 = pneg %p84
        %p257 = pneg %p81
        %p258 = pneg %p105
        %p259 = pneg %p102
        %p260 = pneg %p126
        %p261 = pneg %p123
        %p262 = pneg %p147
        %p263 = pneg %p144
        %p264 = pneg %p168
        %p265 = pneg %p165
        %p266 = pneg %p194
        %p267 = pneg %p191
        %s268 = sand.u32 %s181, 1
        %s269 = scalar_lea.sflag [#allocation3], %s268
        %s270 = sand.u32 %s181, 1
        %s271 = smul.addr %s270, 16
        %s272 = scalar_lea.vmem [#allocation2], %s271
        %s273 = smul.u32 32, %s21
        %p274 = scmp.lt.s32.totalorder %s273, 63
        %s275 = scalar_select %p274, %s273, 63
        %s276 = smul.addr %s275, 8
        %s277 = scalar_lea.vmem %s0, %s276
        %s278 = smul.u32 32, %s21
        %s279 = smul.u32 2, %s21
        %v281 = vld [vmem:[%s277] sm:$0xff]
        %v282 = vld [vmem:[%s277 + $0x8] sm:$0xff]
        %v283 = vld [vmem:[%s277 + $0x10] sm:$0xff]
        %v284 = vld [vmem:[%s277 + $0x18] sm:$0xff]
        %v285 = vld [vmem:[%s277 + $0x20] sm:$0xff]
        %v286 = vld [vmem:[%s277 + $0x28] sm:$0xff]
        %v287 = vld [vmem:[%s277 + $0x30] sm:$0xff]
        %v288 = vld [vmem:[%s277 + $0x38] sm:$0xff]
        %v289 = vld [vmem:[%s277 + $0x40] sm:$0xff]
        %v290 = vld [vmem:[%s277 + $0x48] sm:$0xff]
        %v291 = vld [vmem:[%s277 + $0x50] sm:$0xff]
        %v292 = vld [vmem:[%s277 + $0x58] sm:$0xff]
        %v293 = vld [vmem:[%s277 + $0x60] sm:$0xff]
        %v294 = vld [vmem:[%s277 + $0x68] sm:$0xff]
        %v295 = vld [vmem:[%s277 + $0x70] sm:$0xff]
        %v296 = vld [vmem:[%s277 + $0x78] sm:$0xff]
        %v297 = vld [vmem:[%s277 + $0x80] sm:$0xff]
        %v298 = vld [vmem:[%s277 + $0x88] sm:$0xff]
        %v299 = vld [vmem:[%s277 + $0x90] sm:$0xff]
        %v300 = vld [vmem:[%s277 + $0x98] sm:$0xff]
        %v301 = vld [vmem:[%s277 + $0xa0] sm:$0xff]
        %v302 = vld [vmem:[%s277 + $0xa8] sm:$0xff]
        %v303 = vld [vmem:[%s277 + $0xb0] sm:$0xff]
        %v304 = vld [vmem:[%s277 + $0xb8] sm:$0xff]
        %v305 = vld [vmem:[%s277 + $0xc0] sm:$0xff]
        %v306 = vld [vmem:[%s277 + $0xc8] sm:$0xff]
        %v307 = vld [vmem:[%s277 + $0xd0] sm:$0xff]
        %v308 = vld [vmem:[%s277 + $0xd8] sm:$0xff]
        %v309 = vld [vmem:[%s277 + $0xe0] sm:$0xff]
        %v310 = vld [vmem:[%s277 + $0xe8] sm:$0xff]
        %v311 = vld [vmem:[%s277 + $0xf0] sm:$0xff]
        %v312 = vld [vmem:[%s277 + $0xf8] sm:$0xff]
        %v313 = vpack.c.bf16 %v282, %v281
        %v314 = vpack.c.bf16 %v284, %v283
        %v315 = vpack.c.bf16 %v286, %v285
        %v316 = vpack.c.bf16 %v288, %v287
        %v317 = vpack.c.bf16 %v290, %v289
        %v318 = vpack.c.bf16 %v292, %v291
        %v319 = vpack.c.bf16 %v294, %v293
        %v320 = vpack.c.bf16 %v296, %v295
        %v321 = vpack.c.bf16 %v298, %v297
        %v322 = vpack.c.bf16 %v300, %v299
        %v323 = vpack.c.bf16 %v302, %v301
        %v324 = vpack.c.bf16 %v304, %v303
        %v325 = vpack.c.bf16 %v306, %v305
        %v326 = vpack.c.bf16 %v308, %v307
        %v327 = vpack.c.bf16 %v310, %v309
        %v328 = vpack.c.bf16 %v312, %v311
        %v329 = vld [vmem:[%s1] sm:$0xf]
        %v330 = vld [vmem:[%s1 + $0x4] sm:$0xf]
        %v331 = vld [vmem:[%s1 + $0x8] sm:$0xf]
        %v332 = vld [vmem:[%s1 + $0xc] sm:$0xf]
        %v333 = vld [vmem:[%s1 + $0x10] sm:$0xf]
        %v334 = vld [vmem:[%s1 + $0x14] sm:$0xf]
        %v335 = vld [vmem:[%s1 + $0x18] sm:$0xf]
        %v336 = vld [vmem:[%s1 + $0x1c] sm:$0xf]
        %v337 = vld [vmem:[%s2] sm:$0xff]
        %v338 = vld [vmem:[%s2 + $0x8] sm:$0xff]
        %v339 = vld [vmem:[%s2 + $0x10] sm:$0xff]
        %v340 = vld [vmem:[%s2 + $0x18] sm:$0xff]
        %v341 = vld [vmem:[%s2 + $0x20] sm:$0xff]
        %v342 = vld [vmem:[%s2 + $0x28] sm:$0xff]
        %v343 = vld [vmem:[%s2 + $0x30] sm:$0xff]
        %v344 = vld [vmem:[%s2 + $0x38] sm:$0xff]
        %346 = vset.pattern.permute.xlu0 0
        %347 = vperm.xlu0 %346, %v337
        %v348 = vpop.permute.xlu0 %347
        %351 = vset.pattern.permute.xlu0 0
        %352 = vperm.xlu0 %351, %v338
        %v353 = vpop.permute.xlu0 %352
        %356 = vset.pattern.permute.xlu0 0
        %357 = vperm.xlu0 %356, %v339
        %v358 = vpop.permute.xlu0 %357
        %361 = vset.pattern.permute.xlu0 0
        %362 = vperm.xlu0 %361, %v340
        %v363 = vpop.permute.xlu0 %362
        %366 = vset.pattern.permute.xlu0 0
        %367 = vperm.xlu0 %366, %v341
        %v368 = vpop.permute.xlu0 %367
        %371 = vset.pattern.permute.xlu0 0
        %372 = vperm.xlu0 %371, %v342
        %v373 = vpop.permute.xlu0 %372
        %376 = vset.pattern.permute.xlu0 0
        %377 = vperm.xlu0 %376, %v343
        %v378 = vpop.permute.xlu0 %377
        %381 = vset.pattern.permute.xlu0 0
        %382 = vperm.xlu0 %381, %v344
        %v383 = vpop.permute.xlu0 %382
        %v393 = vunpack.c.l.b16 %v329
        %v394 = vunpack.c.l.b16 %v330
        %v395 = vunpack.c.l.b16 %v331
        %v396 = vunpack.c.l.b16 %v332
        %v397 = vunpack.c.l.b16 %v333
        %v398 = vunpack.c.l.b16 %v334
        %v399 = vunpack.c.l.b16 %v335
        %v400 = vunpack.c.l.b16 %v336
        %v401 = vpack.c.b16 %v394, %v393
        %v402 = vpack.c.b16 %v396, %v395
        %v403 = vpack.c.b16 %v398, %v397
        %v404 = vpack.c.b16 %v400, %v399
        %vm405 = vcmask 261120
        %v407 = vsel %vm405, %v401, 0
        %v410 = vsel %vm405, %v402, 0
        %v413 = vsel %vm405, %v403, 0
        %v416 = vsel %vm405, %v404, 0
        %v419 = vsel %vm405, %v313, 0
        %v422 = vsel %vm405, %v314, 0
        %v425 = vsel %vm405, %v315, 0
        %v428 = vsel %vm405, %v316, 0
        %v431 = vsel %vm405, %v317, 0
        %v434 = vsel %vm405, %v318, 0
        %v437 = vsel %vm405, %v319, 0
        %v440 = vsel %vm405, %v320, 0
        %v443 = vsel %vm405, %v321, 0
        %v446 = vsel %vm405, %v322, 0
        %v449 = vsel %vm405, %v323, 0
        %v452 = vsel %vm405, %v324, 0
        %v455 = vsel %vm405, %v325, 0
        %v458 = vsel %vm405, %v326, 0
        %v461 = vsel %vm405, %v327, 0
        %v464 = vsel %vm405, %v328, 0
        %466 = vmatprep.subr.bf16.mxu0 0
        %467 = vmatpush1.bf16.xpose.msra.mxu0 %v419
        %468 = vmatprep.subr.bf16.mxu0 0
        %469 = vmatpush1.bf16.xpose.msra.mxu0 %v422
        %470 = vmatprep.subr.bf16.mxu0 0
        %471 = vmatpush1.bf16.xpose.msra.mxu0 %v425
        %472 = vmatprep.subr.bf16.mxu0 0
        %473 = vmatpush1.bf16.xpose.msra.mxu0 %v428
        %474 = vmatprep.subr.bf16.mxu0 0
        %475 = vmatpush1.bf16.xpose.msra.mxu0 %v431
        %476 = vmatprep.subr.bf16.mxu0 0
        %477 = vmatpush1.bf16.xpose.msra.mxu0 %v434
        %478 = vmatprep.subr.bf16.mxu0 0
        %479 = vmatpush1.bf16.xpose.msra.mxu0 %v437
        %480 = vmatprep.subr.bf16.mxu0 0
        %481 = vmatpush1.bf16.xpose.msra.mxu0 %v440
        %482 = vmatprep.subr.bf16.mxu0 0
        %483 = vmatpush1.bf16.xpose.msra.mxu0 %v443
        %484 = vmatprep.subr.bf16.mxu0 0
        %485 = vmatpush1.bf16.xpose.msra.mxu0 %v446
        %486 = vmatprep.subr.bf16.mxu0 0
        %487 = vmatpush1.bf16.xpose.msra.mxu0 %v449
        %488 = vmatprep.subr.bf16.mxu0 0
        %489 = vmatpush1.bf16.xpose.msra.mxu0 %v452
        %490 = vmatprep.subr.bf16.mxu0 0
        %491 = vmatpush1.bf16.xpose.msra.mxu0 %v455
        %492 = vmatprep.subr.bf16.mxu0 0
        %493 = vmatpush1.bf16.xpose.msra.mxu0 %v458
        %494 = vmatprep.subr.bf16.mxu0 0
        %495 = vmatpush1.bf16.xpose.msra.mxu0 %v461
        %496 = vmatprep.subr.bf16.mxu0 0
        %497 = vmatpush1.bf16.xpose.msra.mxu0 %v464
        %498 = vmatprep.mubr.bf16.mxu0 0
        %499 = vmatmul.mubr.bf16.gmra.mrb[0].mxu0 %v407
        %v500 = vpop.f32.mrb[0].mxu0
        %v501 = vadd.f32 %v348, %v500
        %v502 = vpop.f32.mrb[0].mxu0
        %v503 = vadd.f32 %v348, %v502
        %v504 = vpop.f32.mrb[0].mxu0
        %v505 = vadd.f32 %v353, %v504
        %v506 = vpop.f32.mrb[0].mxu0
        %v507 = vadd.f32 %v353, %v506
        %508 = vmatprep.mubr.bf16.mxu0 0
        %509 = vmatmul.mubr.bf16.gmra.mrb[0].mxu0 %v410
        %v510 = vpop.f32.mrb[0].mxu0
        %v511 = vadd.f32 %v358, %v510
        %v512 = vpop.f32.mrb[0].mxu0
        %v513 = vadd.f32 %v358, %v512
        %v514 = vpop.f32.mrb[0].mxu0
        %v515 = vadd.f32 %v363, %v514
        %v516 = vpop.f32.mrb[0].mxu0
        %v517 = vadd.f32 %v363, %v516
        %518 = vmatprep.mubr.bf16.mxu0 0
        %519 = vmatmul.mubr.bf16.gmra.mrb[0].mxu0 %v413
        %v520 = vpop.f32.mrb[0].mxu0
        %v521 = vadd.f32 %v368, %v520
        %v522 = vpop.f32.mrb[0].mxu0
        %v523 = vadd.f32 %v368, %v522
        %v524 = vpop.f32.mrb[0].mxu0
        %v525 = vadd.f32 %v373, %v524
        %v526 = vpop.f32.mrb[0].mxu0
        %v527 = vadd.f32 %v373, %v526
        %528 = vmatprep.mubr.bf16.mxu0 0
        %529 = vmatmul.mubr.bf16.gmra.mrb[0].mxu0 %v416
        %v530 = vpop.f32.mrb[0].mxu0
        %v531 = vadd.f32 %v378, %v530
        %v532 = vpop.f32.mrb[0].mxu0
        %v533 = vadd.f32 %v378, %v532
        %v534 = vpop.f32.mrb[0].mxu0
        %v535 = vadd.f32 %v383, %v534
        %v536 = vpop.f32.mrb[0].mxu0
        %v537 = vadd.f32 %v383, %v536
        %538 = vdwg.mxu0
        %v539 = vtanh.pop %v501
        %v540 = vtanh.pop %v503
        %v541 = vtanh.pop %v505
        %v542 = vtanh.pop %v507
        %v543 = vtanh.pop %v511
        %v544 = vtanh.pop %v513
        %v545 = vtanh.pop %v515
        %v546 = vtanh.pop %v517
        %v547 = vtanh.pop %v521
        %v548 = vtanh.pop %v523
        %v549 = vtanh.pop %v525
        %v550 = vtanh.pop %v527
        %v551 = vtanh.pop %v531
        %v552 = vtanh.pop %v533
        %v553 = vtanh.pop %v535
        %v554 = vtanh.pop %v537
        %v555 = vld [vmem:[%s3] sm:$0xf]
        %v556 = vld [vmem:[%s3 + $0x4] sm:$0xf]
        %v557 = vld [vmem:[%s3 + $0x8] sm:$0xf]
        %v558 = vld [vmem:[%s3 + $0xc] sm:$0xf]
        %v559 = vld [vmem:[%s3 + $0x10] sm:$0xf]
        %v560 = vld [vmem:[%s3 + $0x14] sm:$0xf]
        %v561 = vld [vmem:[%s3 + $0x18] sm:$0xf]
        %v562 = vld [vmem:[%s3 + $0x1c] sm:$0xf]
        %v563 = vpack.c.bf16 %v541, %v539
        %v564 = vpack.c.bf16 %v542, %v540
        %v565 = vpack.c.bf16 %v545, %v543
        %v566 = vpack.c.bf16 %v546, %v544
        %v567 = vpack.c.bf16 %v549, %v547
        %v568 = vpack.c.bf16 %v550, %v548
        %v569 = vpack.c.bf16 %v553, %v551
        %v570 = vpack.c.bf16 %v554, %v552
        %v571 = vld [vmem:[%s4] sm:$0xff]
        %v572 = vld [vmem:[%s4 + $0x8] sm:$0xff]
        %v573 = vld [vmem:[%s4 + $0x10] sm:$0xff]
        %v574 = vld [vmem:[%s4 + $0x18] sm:$0xff]
        %v575 = vld [vmem:[%s4 + $0x20] sm:$0xff]
        %v576 = vld [vmem:[%s4 + $0x28] sm:$0xff]
        %v577 = vld [vmem:[%s4 + $0x30] sm:$0xff]
        %v578 = vld [vmem:[%s4 + $0x38] sm:$0xff]
        %580 = vset.pattern.permute.xlu0 0
        %581 = vperm.xlu0 %580, %v571
        %v582 = vpop.permute.xlu0 %581
        %585 = vset.pattern.permute.xlu0 0
        %586 = vperm.xlu0 %585, %v572
        %v587 = vpop.permute.xlu0 %586
        %590 = vset.pattern.permute.xlu0 0
        %591 = vperm.xlu0 %590, %v573
        %v592 = vpop.permute.xlu0 %591
        %595 = vset.pattern.permute.xlu0 0
        %596 = vperm.xlu0 %595, %v574
        %v597 = vpop.permute.xlu0 %596
        %600 = vset.pattern.permute.xlu0 0
        %601 = vperm.xlu0 %600, %v575
        %v602 = vpop.permute.xlu0 %601
        %605 = vset.pattern.permute.xlu0 0
        %606 = vperm.xlu0 %605, %v576
        %v607 = vpop.permute.xlu0 %606
        %610 = vset.pattern.permute.xlu0 0
        %611 = vperm.xlu0 %610, %v577
        %v612 = vpop.permute.xlu0 %611
        %615 = vset.pattern.permute.xlu0 0
        %616 = vperm.xlu0 %615, %v578
        %v617 = vpop.permute.xlu0 %616
        %v627 = vunpack.c.l.b16 %v555
        %v628 = vunpack.c.l.b16 %v556
        %v629 = vunpack.c.l.b16 %v557
        %v630 = vunpack.c.l.b16 %v558
        %v631 = vunpack.c.l.b16 %v559
        %v632 = vunpack.c.l.b16 %v560
        %v633 = vunpack.c.l.b16 %v561
        %v634 = vunpack.c.l.b16 %v562
        %v635 = vpack.c.b16 %v628, %v627
        %v636 = vpack.c.b16 %v630, %v629
        %v637 = vpack.c.b16 %v632, %v631
        %v638 = vpack.c.b16 %v634, %v633
        %vm639 = vcmask 523264
        %v641 = vsel %vm639, %v635, 0
        %v644 = vsel %vm639, %v636, 0
        %v647 = vsel %vm639, %v637, 0
        %v650 = vsel %vm639, %v638, 0
        %652 = vmatprep.subr.bf16.mxu0 %v564
        %653 = vmatpush1.bf16.msra.mxu0 %v563
        %654 = vmatprep.subr.bf16.mxu0 %v566
        %655 = vmatpush1.bf16.msra.mxu0 %v565
        %656 = vmatprep.subr.bf16.mxu0 %v568
        %657 = vmatpush1.bf16.msra.mxu0 %v567
        %658 = vmatprep.subr.bf16.mxu0 %v570
        %659 = vmatpush1.bf16.msra.mxu0 %v569
        %660 = vmatprep.subr.bf16.mxu0 0
        %661 = vmatpush1.bf16.msra.mxu0 0
        %662 = vmatprep.subr.bf16.mxu0 0
        %663 = vmatpush1.bf16.msra.mxu0 0
        %664 = vmatprep.subr.bf16.mxu0 0
        %665 = vmatpush1.bf16.msra.mxu0 0
        %666 = vmatprep.subr.bf16.mxu0 0
        %667 = vmatpush1.bf16.msra.mxu0 0
        %668 = vmatprep.subr.bf16.mxu0 0
        %669 = vmatpush1.bf16.msra.mxu0 0
        %670 = vmatprep.subr.bf16.mxu0 0
        %671 = vmatpush1.bf16.msra.mxu0 0
        %672 = vmatprep.subr.bf16.mxu0 0
        %673 = vmatpush1.bf16.msra.mxu0 0
        %674 = vmatprep.subr.bf16.mxu0 0
        %675 = vmatpush1.bf16.msra.mxu0 0
        %676 = vmatprep.subr.bf16.mxu0 0
        %677 = vmatpush1.bf16.msra.mxu0 0
        %678 = vmatprep.subr.bf16.mxu0 0
        %679 = vmatpush1.bf16.msra.mxu0 0
        %680 = vmatprep.subr.bf16.mxu0 0
        %681 = vmatpush1.bf16.msra.mxu0 0
        %682 = vmatprep.subr.bf16.mxu0 0
        %683 = vmatpush1.bf16.msra.mxu0 0
        %684 = vmatprep.mubr.bf16.mxu0 0
        %685 = vmatmul.mubr.bf16.gmra.mrb[0].mxu0 %v641
        %v686 = vpop.f32.mrb[0].mxu0
        %v687 = vadd.f32 %v582, %v686
        %v688 = vpop.f32.mrb[0].mxu0
        %v689 = vadd.f32 %v582, %v688
        %v690 = vpop.f32.mrb[0].mxu0
        %v691 = vadd.f32 %v587, %v690
        %v692 = vpop.f32.mrb[0].mxu0
        %v693 = vadd.f32 %v587, %v692
        %694 = vmatprep.mubr.bf16.mxu0 0
        %695 = vmatmul.mubr.bf16.gmra.mrb[0].mxu0 %v644
        %v696 = vpop.f32.mrb[0].mxu0
        %v697 = vadd.f32 %v592, %v696
        %v698 = vpop.f32.mrb[0].mxu0
        %v699 = vadd.f32 %v592, %v698
        %v700 = vpop.f32.mrb[0].mxu0
        %v701 = vadd.f32 %v597, %v700
        %v702 = vpop.f32.mrb[0].mxu0
        %v703 = vadd.f32 %v597, %v702
        %704 = vmatprep.mubr.bf16.mxu0 0
        %705 = vmatmul.mubr.bf16.gmra.mrb[0].mxu0 %v647
        %v706 = vpop.f32.mrb[0].mxu0
        %v707 = vadd.f32 %v602, %v706
        %v708 = vpop.f32.mrb[0].mxu0
        %v709 = vadd.f32 %v602, %v708
        %v710 = vpop.f32.mrb[0].mxu0
        %v711 = vadd.f32 %v607, %v710
        %v712 = vpop.f32.mrb[0].mxu0
        %v713 = vadd.f32 %v607, %v712
        %714 = vmatprep.mubr.bf16.mxu0 0
        %715 = vmatmul.mubr.bf16.gmra.mrb[0].mxu0 %v650
        %v716 = vpop.f32.mrb[0].mxu0
        %v717 = vadd.f32 %v612, %v716
        %v718 = vpop.f32.mrb[0].mxu0
        %v719 = vadd.f32 %v612, %v718
        %v720 = vpop.f32.mrb[0].mxu0
        %v721 = vadd.f32 %v617, %v720
        %v722 = vpop.f32.mrb[0].mxu0
        %v723 = vadd.f32 %v617, %v722
        %724 = vdwg.mxu0
        %v725 = vtanh.pop %v687
        %v726 = vtanh.pop %v689
        %v727 = vtanh.pop %v691
        %v728 = vtanh.pop %v693
        %v729 = vtanh.pop %v697
        %v730 = vtanh.pop %v699
        %v731 = vtanh.pop %v701
        %v732 = vtanh.pop %v703
        %v733 = vtanh.pop %v707
        %v734 = vtanh.pop %v709
        %v735 = vtanh.pop %v711
        %v736 = vtanh.pop %v713
        %v737 = vtanh.pop %v717
        %v738 = vtanh.pop %v719
        %v739 = vtanh.pop %v721
        %v740 = vtanh.pop %v723
        %v741 = vld [vmem:[%s5] sm:$0xf]
        %v742 = vpack.c.bf16 %v727, %v725
        %v743 = vpack.c.bf16 %v728, %v726
        %v744 = vpack.c.bf16 %v731, %v729
        %v745 = vpack.c.bf16 %v732, %v730
        %v746 = vpack.c.bf16 %v735, %v733
        %v747 = vpack.c.bf16 %v736, %v734
        %v748 = vpack.c.bf16 %v739, %v737
        %v749 = vpack.c.bf16 %v740, %v738
        %v750 = vld [vmem:[%s6] sm:$0xff]
        %752 = vset.pattern.permute.xlu0 0
        %753 = vperm.xlu0 %752, %v750
        %v754 = vpop.permute.xlu0 %753
        %v757 = vsel %vm639, %v741, 0
        %759 = vmatprep.subr.bf16.mxu0 %v743
        %760 = vmatpush1.bf16.msra.mxu0 %v742
        %761 = vmatprep.subr.bf16.mxu0 %v745
        %762 = vmatpush1.bf16.msra.mxu0 %v744
        %763 = vmatprep.subr.bf16.mxu0 %v747
        %764 = vmatpush1.bf16.msra.mxu0 %v746
        %765 = vmatprep.subr.bf16.mxu0 %v749
        %766 = vmatpush1.bf16.msra.mxu0 %v748
        %767 = vmatprep.subr.bf16.mxu0 0
        %768 = vmatpush1.bf16.msra.mxu0 0
        %769 = vmatprep.subr.bf16.mxu0 0
        %770 = vmatpush1.bf16.msra.mxu0 0
        %771 = vmatprep.subr.bf16.mxu0 0
        %772 = vmatpush1.bf16.msra.mxu0 0
        %773 = vmatprep.subr.bf16.mxu0 0
        %774 = vmatpush1.bf16.msra.mxu0 0
        %775 = vmatprep.subr.bf16.mxu0 0
        %776 = vmatpush1.bf16.msra.mxu0 0
        %777 = vmatprep.subr.bf16.mxu0 0
        %778 = vmatpush1.bf16.msra.mxu0 0
        %779 = vmatprep.subr.bf16.mxu0 0
        %780 = vmatpush1.bf16.msra.mxu0 0
        %781 = vmatprep.subr.bf16.mxu0 0
        %782 = vmatpush1.bf16.msra.mxu0 0
        %783 = vmatprep.subr.bf16.mxu0 0
        %784 = vmatpush1.bf16.msra.mxu0 0
        %785 = vmatprep.subr.bf16.mxu0 0
        %786 = vmatpush1.bf16.msra.mxu0 0
        %787 = vmatprep.subr.bf16.mxu0 0
        %788 = vmatpush1.bf16.msra.mxu0 0
        %789 = vmatprep.subr.bf16.mxu0 0
        %790 = vmatpush1.bf16.msra.mxu0 0
        %791 = vmatprep.mubr.bf16.mxu0 0
        %792 = vmatmul.mubr.bf16.gmra.mrb[0].mxu0 %v757
        %v793 = vpop.f32.mrb[0].mxu0
        %v794 = vadd.f32 %v754, %v793
        %v795 = vpop.f32.mrb[0].mxu0
        %v796 = vadd.f32 %v754, %v795
        %v797 = vpop.f32.mrb[0].mxu0
        %v798 = vpop.f32.mrb[0].mxu0
        %799 = vdwg.mxu0
        %v800 = vtanh.pop %v794
        %v801 = vtanh.pop %v796
        %v802 = vmul.f32 %v800, 2.0
        %v803 = vmul.f32 %v801, 2.0
        %804 = vst [vmem:[%s272] sm:$0xf] %v802
        %805 = vst [vmem:[%s272 + $0x8] sm:$0xf] %v803
        %v806 = vmax.f32 %v794, 0.0
        %v807 = vmax.f32 %v796, 0.0
        %v808 = vand.u32 2147483647, %v794
        %v809 = vand.u32 2147483647, %v796
        %v810 = vsub.f32 0.0, %v808
        %v811 = vsub.f32 0.0, %v809
        %v812 = vmul.f32 %v810, 1.442695
        %v813 = vpow.pop %v812
        %v814 = vmul.f32 %v811, 1.442695
        %v815 = vpow.pop %v814
        %v816 = vadd.f32 %v813, 1.0
        %v817 = vlog2.pop %v816
        %v818 = vmul.f32 %v817, 0.6931472
        %v819 = vmul.f32 -0.5, %v813
        %v820 = vadd.f32 %v819, 1.0
        %v821 = vmul.f32 %v820, %v813
        %v822 = vand.u32 2147483647, %v813
        %vm823 = vcmp.lt.f32.partialorder %v822, 0.0004427343
        %v824 = vsel %vm823, %v821, %v818
        %v825 = vadd.f32 %v815, 1.0
        %v826 = vlog2.pop %v825
        %v827 = vmul.f32 %v826, 0.6931472
        %v828 = vmul.f32 -0.5, %v815
        %v829 = vadd.f32 %v828, 1.0
        %v830 = vmul.f32 %v829, %v815
        %v831 = vand.u32 2147483647, %v815
        %vm832 = vcmp.lt.f32.partialorder %v831, 0.0004427343
        %v833 = vsel %vm832, %v830, %v827
        %v834 = vadd.f32 %v806, %v824
        %v835 = vadd.f32 %v807, %v833
        %836 = vst [vmem:[%s272] sm:$0xf0] %v834
        %837 = vst [vmem:[%s272 + $0x8] sm:$0xf0] %v835
        %s838 = sand.u32 %s181, 1
        %s839 = scalar_lea.sflag [#allocation3], %s838
        %s840 = sand.u32 %s181, 1
        %s841 = smul.addr %s840, 16
        %s842 = scalar_lea.vmem [#allocation2], %s841
        // Predicated region
        $region49: #{tpu_custom_call.1} parent=47 // pred_check
          %p843 = pneg %p191
        $region50: #{tpu_custom_call.1} parent=47 // pred_check_branch
          %845 = sbr.rel (%p843) target = $region52
        $region51: #{tpu_custom_call.1} parent=47 // pred_region
          %s846 = smul.u32 2, %s21
          %s848 = ssub.s32 256, 256
          %849 = vsyncadd %s839, %s848
          %s850 = smul.addr %s846, 128
          %s851 = scalar_lea.hbm %s7, %s850
          %s853 = sshll.u32 %s842, 4
          %s854 = int_to_ptr.vmem [resolvable:$true] %s853
          %856 = dma.vmem_to_hbm [thread:$0]  %s854, 256, %s851, %s839
        $region52: #{tpu_custom_call.1} parent=47 // pred_fallthru
          _
      $region48: #{tpu_custom_call.1} parent=5 // pred_fallthru
        _
      %p857 = scmp.le.s32.totalorder 2, %s16
      // Predicated region
      $region53: #{tpu_custom_call.1} parent=5 // pred_check
        %p858 = pneg %p857
      $region54: #{tpu_custom_call.1} parent=5 // pred_check_branch
        %860 = sbr.rel (%p858) target = $region56
      $region55: #{tpu_custom_call.1} parent=5 // pred_region
        %s861 = ssub.s32 %s16, 2
        // Predicated region
        $region57: #{tpu_custom_call.1} parent=55 // pred_check
          %p862 = pneg %p197
        $region58: #{tpu_custom_call.1} parent=55 // pred_check_branch
          %864 = sbr.rel (%p862) target = $region60
        $region59: #{tpu_custom_call.1} parent=55 // pred_region
          %s865 = sand.u32 %s182, 1
          %s866 = scalar_lea.sflag [#allocation3], %s865
          %s867 = sand.u32 %s182, 1
          %s868 = smul.addr %s867, 16
          %s869 = scalar_lea.vmem [#allocation2], %s868
          %870 = dma.done %s866, 256
        $region60: #{tpu_custom_call.1} parent=55 // pred_fallthru
          _
      $region56: #{tpu_custom_call.1} parent=5 // pred_fallthru
        _
    $region6: #{tpu_custom_call.1} parent=1 // loop_footer
      %s20 = sadd.s32 1, %s16
    $region7: #{tpu_custom_call.1} parent=1 // loop_footer_branch
      %15 = sbr.rel target = $region3
    $region8: #{tpu_custom_call.1} parent=1 // loop_exit
      _
    %871 = vsyncpa [#allocation3], 1
    %s872 = scalar_lea.sflag [#allocation3], 1
    %873 = vsyncpa %s872, 1

</llo_original>
